<compile_context>
chip_gen: v6e
topology: v6e:2x2x1
jax: 0.10.0
libtpu: 0.0.40
codegen_flags: <defaults>
</compile_context>

<pallas_src>
import jax
import jax.numpy as jnp
from jax.experimental import pallas as pl
from jax.experimental.pallas import tpu as pltpu

EPS = 1e-10


def _l1norm_kernel(x_ref, o_ref):
    # x_ref / o_ref: (tile_n, D) blocks in VMEM.
    x = x_ref[...]
    # f32-accumulated row reduction; avoids materializing a full f32 copy of
    # the block for 16-bit inputs.
    norm = jnp.sum(jnp.abs(x), axis=1, keepdims=True, dtype=jnp.float32) + EPS
    inv = pl.reciprocal(norm, approx=False)            # exact 1/norm (EUP slot)
    o_ref[...] = (x * inv).astype(o_ref.dtype)


def _pick_tile_n(N, D, itemsize, block_bytes):
    """Rows per block: ~block_bytes of input per grid step, sublane-aligned,
    capped so the grid keeps a few steps (v7x has 2 TCs + double buffering)."""
    mult = max(8, 32 // itemsize)              # 8 for f32, 16 for bf16, 32 for i8
    tile = max(block_bytes // max(D * itemsize, 1), mult)
    tile = (tile // mult) * mult
    # Keep >= ~4 grid steps when N allows it.
    grid_cap = -(-N // 4)                      # cdiv(N, 4)
    grid_cap = max(((grid_cap + mult - 1) // mult) * mult, mult)
    tile = min(tile, grid_cap)
    if tile >= N:
        return N                               # single block == full dim (always legal)
    return tile                                # multiple of `mult`; partial last block OK


def l1norm(x, *, tile_n=None, block_bytes=2 << 20):
    """Row-wise L1 normalization: x / (sum(|x|, axis=1, keepdims=True) + eps).

    Default block budget is ~2 MiB (input side): with default double-buffered
    input + output this stays well inside v5e's 16 MiB scoped VMEM and is in
    the near-roofline streaming regime on v6e. On v7x, pass a larger
    block_bytes (4-8 MiB) together with vmem_limit_bytes if desired.
    """
    N, D = x.shape
    itemsize = jnp.dtype(x.dtype).itemsize

    if tile_n is None:
        tile_n = _pick_tile_n(N, D, itemsize, block_bytes)
    else:
        tile_n = min(tile_n, N)
        if tile_n < N:
            tile_n = max((tile_n // 8) * 8, 8)
            if tile_n >= N:
                tile_n = N

    n_blocks = pl.cdiv(N, tile_n)

    cost = pl.CostEstimate(
        flops=3 * N * D,
        transcendentals=0,
        bytes_accessed=2 * N * D * itemsize,
    )

    return pl.pallas_call(
        _l1norm_kernel,
        out_shape=jax.ShapeDtypeStruct((N, D), x.dtype),
        grid_spec=pltpu.PrefetchScalarGridSpec(
            num_scalar_prefetch=0,
            grid=(n_blocks,),
            in_specs=[pl.BlockSpec((tile_n, D), lambda i: (i, 0))],
            out_specs=pl.BlockSpec((tile_n, D), lambda i: (i, 0)),
        ),
        compiler_params=pltpu.CompilerParams(
            dimension_semantics=("parallel",),
        ),
        cost_estimate=cost,
    )(x)


if __name__ == "__main__":
    key = jax.random.PRNGKey(0)
    # HardNet-style descriptor batch: 100 rows, 128 features.
    # N=100 exercises the multi-step grid and the partial-last-block path
    # (auto tile_n = 32 -> grid of 4 with a ragged final block).
    x = jax.random.normal(key, (100, 128), dtype=jnp.float32)

    out = l1norm(x)
    out = jax.block_until_ready(out)

    # Reference check in plain JAX.
    ref = x / (jnp.sum(jnp.abs(x), axis=1, keepdims=True) + EPS)
    assert out.shape == ref.shape, "shape mismatch vs reference"
    assert jnp.allclose(out, ref, atol=1e-6, rtol=1e-6), "mismatch vs reference"

    print("KERNEL_OK")
</pallas_src>

<mosaic_0001>
module attributes {stable_mosaic.version = 11 : i64} {
  func.func @_l1norm_kernel(%arg0: i32, %arg1: memref<32x128xf32, #tpu.memory_space<vmem>>, %arg2: memref<32x128xf32, #tpu.memory_space<vmem>>) attributes {dimension_semantics = [#tpu.dimension_semantics<parallel>], iteration_bounds = array<i64: 4>, scalar_prefetch = 0 : i64, scratch_operands = 0 : i64, tpu.core_type = #tpu.core_type<tc>, window_params = [{transform_indices = @transform_0, window_bounds = array<i64: 32, 128>}, {transform_indices = @transform_1, window_bounds = array<i64: 32, 128>}]} {
    %c0 = arith.constant 0 : index
    %c0_0 = arith.constant 0 : index
    %0 = vector.load %arg1[%c0, %c0_0] : memref<32x128xf32, #tpu.memory_space<vmem>>, vector<32x128xf32>
    %1 = math.absf %0 : vector<32x128xf32>
    %cst = arith.constant dense<0.000000e+00> : vector<32xf32>
    %2 = vector.multi_reduction <add>, %1, %cst [1] : vector<32x128xf32> to vector<32xf32>
    %3 = vector.shape_cast %2 : vector<32xf32> to vector<32x1xf32>
    %cst_1 = arith.constant 1.000000e-10 : f32
    %4 = vector.broadcast %cst_1 : f32 to vector<32x1xf32>
    %5 = arith.addf %3, %4 : vector<32x1xf32>
    %6 = tpu.reciprocal %5 : vector<32x1xf32> -> vector<32x1xf32>
    %7 = vector.broadcast %6 : vector<32x1xf32> to vector<32x128xf32>
    %8 = arith.mulf %0, %7 : vector<32x128xf32>
    %c0_2 = arith.constant 0 : index
    %c0_3 = arith.constant 0 : index
    %9 = vector.load %arg2[%c0_2, %c0_3] : memref<32x128xf32, #tpu.memory_space<vmem>>, vector<32x128xf32>
    tpu.vector_store %arg2[%c0_2, %c0_3], %8 {strides = array<i32>} : memref<32x128xf32, #tpu.memory_space<vmem>>, vector<32x128xf32>,
    return
  }
  func.func @transform_0(%arg0: i32) -> (i32, i32) {
    %c0_i32 = arith.constant 0 : i32
    %c0_i32_0 = arith.constant 0 : i32
    return %arg0, %c0_i32 : i32, i32
  }
  func.func @transform_1(%arg0: i32) -> (i32, i32) {
    %c0_i32 = arith.constant 0 : i32
    %c0_i32_0 = arith.constant 0 : i32
    return %arg0, %c0_i32 : i32, i32
  }
}

</mosaic_0001>

<llo_original>
// kernel: tpu_custom_call.1
$region0: #{tpu_custom_call.1}
  #allocation0 [shape = 'u32[]', space=smem, size = 0x4, offset = 0x4, fixed_abs, tag = 'smem constant byte address 0x4 - core index']
  #allocation1 [shape = 'u32[144,128]{1,0:T(1,128)}', space=vmem, size = 0x12000, scoped, tag = 'internal scratch']
  %s0 = inlined_call_operand.hbm [shape: f32[100,128], index: 0, kind: input, shape index: {}]
  %s1 = inlined_call_operand.hbm [shape: f32[100,128], index: 1, kind: output, shape index: {}]
  %s2 = sld [smem:[#allocation0]]
  $region41: #{tpu_custom_call.1} parent=0
    _
  %s4 = ssub.s32 1, %s2
  %s5 = scalar_select 0, %s4, %s2
  $region1: #{tpu_custom_call.1} parent=0
    #allocation2 [shape = 'u8[32768]{0}', space=vmem, size = 0x8000, scoped, tag = 'input window, operand 0']
    #allocation3 [shape = 's32[2]{0}', space=sflag, size = 0x8, scoped, tag = 'scoped memory for tpu_custom_call.1']
    #allocation4 [shape = 's32[2]{0}', space=sflag, size = 0x8, scoped, tag = 'scoped memory for tpu_custom_call.1']
    #allocation5 [shape = 'u8[32768]{0}', space=vmem, size = 0x8000, scoped, tag = 'output window, operand 0']
    %6 = vsyncpa [#allocation3], 0
    %s7 = scalar_lea.sflag [#allocation3], 1
    %8 = vsyncpa %s7, 0
    %9 = vsyncpa [#allocation4], 0
    %s10 = scalar_lea.sflag [#allocation4], 1
    %11 = vsyncpa %s10, 0
    loop: start=0, step=1, limit=6
    $region2: #{tpu_custom_call.1} parent=1 // loop_pre_header
      _
    $region3: #{tpu_custom_call.1} parent=1 // loop_header
      %s13 = sphi 0, %s17
      %p14 = scmp.ge.s32.totalorder %s13, 6
      %s23 = sphi 0, %s25
      %s26 = sphi 0, %s23
      %s27 = sphi 0, %s26
      %s43 = sphi 0, %s27
      %s49 = sphi 0, %s51
      %s52 = sphi 0, %s49
      %s53 = sphi 0, %s52
      %s69 = sphi 0, %s53
    $region4: #{tpu_custom_call.1} parent=1 // loop_header_branch
      %16 = sbr.rel (%p14) target = $region8
    $region5: #{tpu_custom_call.1} parent=1 // loop_body
      %s18 = ssub.s32 %s13, 1
      %s19 = ssub.s32 %s13, 2
      %s20 = sadd.s32 %s13, 1
      %s21 = ssub.s32 %s13, %s20
      %p22 = scmp.eq.s32.totalorder %s21, 0
      %s24 = sadd.s32 %s23, 1
      %s25 = scalar_select %p22, %s23, %s24
      %p28 = pneg %p22
      %p29 = scmp.eq.s32.totalorder %s13, 3
      %p30 = por %p28, %p29
      %p31 = scmp.ne.s32.totalorder %s23, %s26
      %p32 = scmp.eq.s32.totalorder %s13, 0
      %p33 = por %p31, %p32
      %p34 = scmp.ne.s32.totalorder %s23, %s26
      %p35 = scmp.eq.s32.totalorder %s18, 3
      %p36 = por %p34, %p35
      %p37 = scmp.ne.s32.totalorder %s26, %s27
      %p38 = scmp.eq.s32.totalorder %s18, 0
      %p39 = por %p37, %p38
      %p40 = scmp.ne.s32.totalorder %s26, %s27
      %p41 = scmp.eq.s32.totalorder %s19, 3
      %p42 = por %p40, %p41
      %p44 = scmp.ne.s32.totalorder %s27, %s43
      %p45 = scmp.eq.s32.totalorder %s19, 0
      %p46 = por %p44, %p45
      %s47 = ssub.s32 %s13, %s20
      %p48 = scmp.eq.s32.totalorder %s47, 0
      %s50 = sadd.s32 %s49, 1
      %s51 = scalar_select %p48, %s49, %s50
      %p54 = pneg %p48
      %p55 = scmp.eq.s32.totalorder %s13, 3
      %p56 = por %p54, %p55
      %p57 = scmp.ne.s32.totalorder %s49, %s52
      %p58 = scmp.eq.s32.totalorder %s13, 0
      %p59 = por %p57, %p58
      %p60 = scmp.ne.s32.totalorder %s49, %s52
      %p61 = scmp.eq.s32.totalorder %s18, 3
      %p62 = por %p60, %p61
      %p63 = scmp.ne.s32.totalorder %s52, %s53
      %p64 = scmp.eq.s32.totalorder %s18, 0
      %p65 = por %p63, %p64
      %p66 = scmp.ne.s32.totalorder %s52, %s53
      %p67 = scmp.eq.s32.totalorder %s19, 3
      %p68 = por %p66, %p67
      %p70 = scmp.ne.s32.totalorder %s53, %s69
      %p71 = scmp.eq.s32.totalorder %s19, 0
      %p72 = por %p70, %p71
      %p73 = scmp.le.s32.totalorder 1, %s13
      %p74 = scmp.lt.s32.totalorder %s13, 5
      %p75 = pnand %p73, %p74
      %p76 = pneg %p75
      // Predicated region
      $region9: #{tpu_custom_call.1} parent=5 // pred_check
        _
      $region10: #{tpu_custom_call.1} parent=5 // pred_check_branch
        %78 = sbr.rel (%p75) target = $region12
      $region11: #{tpu_custom_call.1} parent=5 // pred_region
        %s79 = ssub.s32 %s13, 1
      $region12: #{tpu_custom_call.1} parent=5 // pred_fallthru
        _
      %p80 = scmp.lt.s32.totalorder %s13, 4
      // Predicated region
      $region13: #{tpu_custom_call.1} parent=5 // pred_check
        %p81 = pneg %p80
      $region14: #{tpu_custom_call.1} parent=5 // pred_check_branch
        %83 = sbr.rel (%p81) target = $region16
      $region15: #{tpu_custom_call.1} parent=5 // pred_region
        // Predicated region
        $region17: #{tpu_custom_call.1} parent=15 // pred_check
          %p84 = pneg %p33
        $region18: #{tpu_custom_call.1} parent=15 // pred_check_branch
          %86 = sbr.rel (%p84) target = $region20
        $region19: #{tpu_custom_call.1} parent=15 // pred_region
          %s87 = sand.u32 %s23, 1
          %s88 = scalar_lea.sflag [#allocation3], %s87
          %s89 = sand.u32 %s23, 1
          %s90 = smul.addr %s89, 32
          %s91 = scalar_lea.vmem [#allocation2], %s90
          %s92 = smul.u32 4, %s13
          %s93 = ssub.s32 13, %s92
          %p94 = scmp.lt.s32.totalorder %s93, 4
          %s95 = scalar_select %p94, %s93, 4
          %s96 = smul.u32 128, %s95
          %s98 = ssub.s32 512, %s96
          %99 = vsyncadd %s88, %s98
          %p100 = scmp.ne.s32.totalorder 0, %s96
          %s101 = smul.addr %s92, 128
          %s102 = scalar_lea.hbm %s0, %s101
          %s103 = smul.u32 8, %s95
          %s104 = sshll.u32 %s91, 4
          %s105 = int_to_ptr.vmem [resolvable:$true] %s104
          %s106 = sshll.u32 %s103, 4
          %110 = dma.hbm_to_vmem [thread:$0]  (%p100), %s102, %s106, %s105, %s88, 128, 128, 8
        $region20: #{tpu_custom_call.1} parent=15 // pred_fallthru
          _
      $region16: #{tpu_custom_call.1} parent=5 // pred_fallthru
        _
      %p111 = scmp.le.s32.totalorder 1, %s13
      %p112 = scmp.lt.s32.totalorder %s13, 5
      %p113 = pnand %p111, %p112
      %p114 = pneg %p113
      // Predicated region
      $region21: #{tpu_custom_call.1} parent=5 // pred_check
        _
      $region22: #{tpu_custom_call.1} parent=5 // pred_check_branch
        %116 = sbr.rel (%p113) target = $region24
      $region23: #{tpu_custom_call.1} parent=5 // pred_region
        %s117 = ssub.s32 %s13, 1
        %s118 = sand.u32 %s26, 1
        %s119 = scalar_lea.sflag [#allocation3], %s118
        %s120 = sand.u32 %s26, 1
        %s121 = smul.addr %s120, 32
        %s122 = scalar_lea.vmem [#allocation2], %s121
        // Predicated region
        $region25: #{tpu_custom_call.1} parent=23 // pred_check
          %p123 = pneg %p39
        $region26: #{tpu_custom_call.1} parent=23 // pred_check_branch
          %125 = sbr.rel (%p123) target = $region28
        $region27: #{tpu_custom_call.1} parent=23 // pred_region
          %126 = dma.done %s119, 512
        $region28: #{tpu_custom_call.1} parent=23 // pred_fallthru
          _
        %s127 = sand.u32 %s26, 1
        %s128 = scalar_lea.sflag [#allocation3], %s127
        %s129 = sand.u32 %s26, 1
        %s130 = smul.addr %s129, 32
        %s131 = scalar_lea.vmem [#allocation2], %s130
        %p132 = pneg %p39
        %p133 = pneg %p36
        %p134 = pneg %p65
        %p135 = pneg %p62
        %s136 = sand.u32 %s52, 1
        %s137 = scalar_lea.sflag [#allocation4], %s136
        %s138 = sand.u32 %s52, 1
        %s139 = smul.addr %s138, 32
        %s140 = scalar_lea.vmem [#allocation5], %s139
        %s141 = smul.u32 4, %s18
        %s142 = ssub.s32 13, %s141
        %p143 = scmp.lt.s32.totalorder %s142, 4
        %s144 = scalar_select %p143, %s142, 4
        %s145 = smul.u32 128, %s144
        %s146 = smul.u32 4, %s18
        %s147 = ssub.s32 13, %s146
        %p148 = scmp.lt.s32.totalorder %s147, 4
        %s149 = scalar_select %p148, %s147, 4
        %s150 = smul.u32 128, %s149
        %v151 = vld [vmem:[%s122] sm:$0xff]
        %v152 = vld [vmem:[%s122 + $0x8] sm:$0xff]
        %v153 = vld [vmem:[%s122 + $0x10] sm:$0xff]
        %v154 = vld [vmem:[%s122 + $0x18] sm:$0xff]
        %v155 = vand.u32 2147483647, %v151
        %v156 = vand.u32 2147483647, %v152
        %v157 = vand.u32 2147483647, %v153
        %v158 = vand.u32 2147483647, %v154
        %159 = vadd.xlane.f32.xlu0 %v155
        %v160 = vpop.xlane.xlu0 %159
        %161 = vadd.xlane.f32.xlu0 %v156
        %v162 = vpop.xlane.xlu0 %161
        %163 = vadd.xlane.f32.xlu0 %v157
        %v164 = vpop.xlane.xlu0 %163
        %165 = vadd.xlane.f32.xlu0 %v158
        %v166 = vpop.xlane.xlu0 %165
        %v167 = vadd.f32 %v160, 1e-10
        %v168 = vadd.f32 %v162, 1e-10
        %v169 = vadd.f32 %v164, 1e-10
        %v170 = vadd.f32 %v166, 1e-10
        %v171 = vrcp.pop %v167
        %v172 = vrcp.pop %v168
        %v173 = vrcp.pop %v169
        %v174 = vrcp.pop %v170
        %v175 = vmul.f32 %v151, %v171
        %v176 = vmul.f32 %v152, %v172
        %v177 = vmul.f32 %v153, %v173
        %v178 = vmul.f32 %v154, %v174
        %179 = vst [vmem:[%s140] sm:$0xff] %v175
        %180 = vst [vmem:[%s140 + $0x8] sm:$0xff] %v176
        %181 = vst [vmem:[%s140 + $0x10] sm:$0xff] %v177
        %182 = vst [vmem:[%s140 + $0x18] sm:$0xff] %v178
        %s183 = sand.u32 %s52, 1
        %s184 = scalar_lea.sflag [#allocation4], %s183
        %s185 = sand.u32 %s52, 1
        %s186 = smul.addr %s185, 32
        %s187 = scalar_lea.vmem [#allocation5], %s186
        // Predicated region
        $region29: #{tpu_custom_call.1} parent=23 // pred_check
          %p188 = pneg %p62
        $region30: #{tpu_custom_call.1} parent=23 // pred_check_branch
          %190 = sbr.rel (%p188) target = $region32
        $region31: #{tpu_custom_call.1} parent=23 // pred_region
          %s191 = smul.u32 4, %s18
          %s192 = ssub.s32 13, %s191
          %p193 = scmp.lt.s32.totalorder %s192, 4
          %s194 = scalar_select %p193, %s192, 4
          %s195 = smul.u32 128, %s194
          %s197 = ssub.s32 512, %s195
          %198 = vsyncadd %s184, %s197
          %p199 = scmp.ne.s32.totalorder 0, %s195
          %s200 = smul.addr %s191, 128
          %s201 = scalar_lea.hbm %s1, %s200
          %s202 = smul.u32 8, %s194
          %s203 = sshll.u32 %s187, 4
          %s204 = int_to_ptr.vmem [resolvable:$true] %s203
          %s205 = sshll.u32 %s202, 4
          %209 = dma.vmem_to_hbm [thread:$0]  (%p199), %s204, %s205, %s201, %s184, 128, 128, 8
        $region32: #{tpu_custom_call.1} parent=23 // pred_fallthru
          _
      $region24: #{tpu_custom_call.1} parent=5 // pred_fallthru
        _
      %p210 = scmp.le.s32.totalorder 2, %s13
      // Predicated region
      $region33: #{tpu_custom_call.1} parent=5 // pred_check
        %p211 = pneg %p210
      $region34: #{tpu_custom_call.1} parent=5 // pred_check_branch
        %213 = sbr.rel (%p211) target = $region36
      $region35: #{tpu_custom_call.1} parent=5 // pred_region
        %s214 = ssub.s32 %s13, 2
        // Predicated region
        $region37: #{tpu_custom_call.1} parent=35 // pred_check
          %p215 = pneg %p68
        $region38: #{tpu_custom_call.1} parent=35 // pred_check_branch
          %217 = sbr.rel (%p215) target = $region40
        $region39: #{tpu_custom_call.1} parent=35 // pred_region
          %s218 = sand.u32 %s53, 1
          %s219 = scalar_lea.sflag [#allocation4], %s218
          %s220 = sand.u32 %s53, 1
          %s221 = smul.addr %s220, 32
          %s222 = scalar_lea.vmem [#allocation5], %s221
          %223 = dma.done %s219, 512
        $region40: #{tpu_custom_call.1} parent=35 // pred_fallthru
          _
      $region36: #{tpu_custom_call.1} parent=5 // pred_fallthru
        _
    $region6: #{tpu_custom_call.1} parent=1 // loop_footer
      %s17 = sadd.s32 1, %s13
    $region7: #{tpu_custom_call.1} parent=1 // loop_footer_branch
      %12 = sbr.rel target = $region3
    $region8: #{tpu_custom_call.1} parent=1 // loop_exit
      _
    %224 = vsyncpa [#allocation3], 1
    %s225 = scalar_lea.sflag [#allocation3], 1
    %226 = vsyncpa %s225, 1
    %227 = vsyncpa [#allocation4], 1
    %s228 = scalar_lea.sflag [#allocation4], 1
    %229 = vsyncpa %s228, 1

</llo_original>
